<compile_context>
chip_gen: v7x
topology: tpu7x:2x2x1
jax: 0.10.0
libtpu: 0.0.40
codegen_flags: <defaults>
</compile_context>

<pallas_src>
from functools import partial

import jax
import jax.numpy as jnp
import numpy as np
from jax import lax
from jax.experimental import pallas as pl
from jax.experimental.pallas import tpu as pltpu

N_MAX = 128   # max samples per call (one 128-lane tile; the module's default batch_size)


def _aploss_kernel(data_ref, cols_ref, out_ref, *, margin, beta, n):
    # data_ref: (4, 128) f32, lane-major per-anchor rows:
    #   row 0 = scores, row 1 = labels (1.0 = positive),
    #   row 2 = u_all gathered per sample, row 3 = u_pos gathered per sample.
    # cols_ref: (R, 2) f32, sublane-major per-compared-sample columns:
    #   col 0 = scores (rows >= n padded with -1e30 so the hinge is exactly 0),
    #   col 1 = labels (rows >= n padded with 0).
    # out_ref : (8, 128) f32 packed result:
    #   row 0 = u_all_new per sample, row 1 = u_pos_new per sample, [2, :] = loss.
    lanes = out_ref.shape[1]

    data = data_ref[...]                  # (4, C)
    s_anchor = data[0:1, :]               # (1, C) anchor scores (lane-major)
    lab_anchor = data[1:2, :]             # (1, C) anchor-is-positive mask
    u_all_old = data[2:3, :]              # (1, C)
    u_pos_old = data[3:4, :]              # (1, C)

    cmp_cols = cols_ref[...]              # (R, 2)
    s_cmp = cmp_cols[:, 0:1]              # (R, 1) compared-sample scores (sublane-major)
    lab_cmp = cmp_cols[:, 1:2]            # (R, 1) compared-sample positive mask

    # Squared hinge with compared samples on sublanes, anchors on lanes:
    #   h[j, i] = max(margin - (s_anchor[i] - s_cmp[j]), 0)^2
    # Padded rows (s_cmp = -1e30) clamp to 0, so no validity mask is needed.
    hinge = jnp.maximum(margin - s_anchor + s_cmp, 0.0)      # (R, C)
    h = hinge * hinge

    # Per-anchor sums: sublane-direction reductions, results already lane-major.
    sum_all = jnp.sum(h, axis=0, keepdims=True)              # (1, C)
    sum_pos = jnp.sum(h * lab_cmp, axis=0, keepdims=True)    # (1, C)

    # Moving-average state update (mean over the n real samples folded into beta/n).
    beta_over_n = beta / float(n)
    u_all_new = (1.0 - beta) * u_all_old + beta_over_n * sum_all
    u_pos_new = (1.0 - beta) * u_pos_old + beta_over_n * sum_pos

    # loss = sum_{i,j} p[i,j] h[i,j]
    #      = sum_{i positive} u_pos[i]*sum_all[i]/u_all[i]^2 - sum_pos[i]/u_all[i]
    # (p is detached in the original, so only the forward value matters here.)
    # NOTE: like the reference, this divides by u_all_new^2; with margin > 0 the
    # self-comparison term keeps it strictly positive for positive anchors.
    anchor_pos = lab_anchor > 0.5
    u_safe = jnp.where(anchor_pos, u_all_new, 1.0)            # keep non-anchors finite
    per_anchor = (u_pos_new * sum_all) / (u_safe * u_safe) - sum_pos / u_safe
    loss = jnp.sum(jnp.where(anchor_pos, per_anchor, 0.0),
                   axis=1, keepdims=True)                     # (1, 1)

    # Single lane-dense (8, 128) packed output: one unmasked store, one 4 KiB DMA.
    rid = lax.broadcasted_iota(jnp.int32, (8, lanes), 0)
    out_ref[...] = jnp.where(rid == 0, u_all_new,
                   jnp.where(rid == 1, u_pos_new,
                   jnp.where(rid == 2, loss, 0.0)))


@partial(jax.jit, static_argnames=("margin", "beta"), donate_argnums=(3, 4))
def aploss_sh(y_pred, y_true, index_s, u_all, u_pos, *, margin=1.0, beta=0.99):
    """Functional APLoss_SH forward. Returns (loss, u_all_updated, u_pos_updated).

    y_pred : (n,) scores, n <= 128.
    y_true : (n,) 0/1 labels (number of positives may be dynamic).
    index_s: (P,) dataset indices of this batch's positive samples, in batch order.
    u_all, u_pos : (data_len, 1) persistent moving-average state (donated).
    """
    n = y_pred.shape[0]
    if n > N_MAX:
        # TODO(synk): for n > 128 this needs a column-tiled two-pass grid
        # (row-sum pass, then loss pass) with a VMEM accumulator.
        raise ValueError(f"n={n} exceeds the single-tile limit of {N_MAX}")
    data_len = u_all.shape[0]
    rows_cmp = max(8, -(-n // 8) * 8)      # compared-sample rows, padded to mult of 8

    yp = y_pred.astype(jnp.float32)
    yt = y_true.astype(jnp.float32)
    idx = index_s.astype(jnp.int32)

    # batch position -> dataset index of each (positive) sample; supports a
    # dynamic number of positives (no host-side argsort / static num_pos).
    pos_rank = jnp.clip(jnp.cumsum(yt.astype(jnp.int32)) - 1, 0, idx.shape[0] - 1)
    idx_per_sample = idx[pos_rank]                     # (n,)
    u_all_g = u_all[idx_per_sample, 0]                 # (n,) gathered state
    u_pos_g = u_pos[idx_per_sample, 0]

    pad = N_MAX - n
    data = jnp.stack([jnp.pad(yp, (0, pad)),
                      jnp.pad(yt, (0, pad)),
                      jnp.pad(u_all_g, (0, pad)),
                      jnp.pad(u_pos_g, (0, pad))], axis=0)             # (4, 128) f32

    pad_r = rows_cmp - n
    cols = jnp.stack([jnp.pad(yp, (0, pad_r), constant_values=-1e30),
                      jnp.pad(yt, (0, pad_r))], axis=1)                # (rows_cmp, 2)

    kernel = partial(_aploss_kernel, margin=float(margin), beta=float(beta), n=n)
    vmem = pl.BlockSpec(memory_space=pltpu.MemorySpace.VMEM)

    # TODO(synk): if many independent batches are evaluated per step, lift this
    # to grid=(B,) with dimension_semantics=("parallel",) to amortize launch
    # overhead (and use both TensorCores on v7x).
    packed = pl.pallas_call(
        kernel,
        in_specs=[vmem, vmem],
        out_specs=vmem,
        out_shape=jax.ShapeDtypeStruct((8, N_MAX), jnp.float32),
    )(data, cols)

    loss = packed[2, 0]
    new_all = packed[0, :n]
    new_pos = packed[1, :n]

    # Scatter per-positive updates back into the donated state buffers;
    # negatives get an out-of-bounds index and are dropped.
    # TODO(synk): for very large data_len, alias u_all/u_pos into the kernel
    # (input_output_aliases) and scatter the <=128 rows in-kernel via DMA.
    scatter_idx = jnp.where(yt > 0.5, idx_per_sample, data_len)
    u_all_updated = u_all.at[scatter_idx, 0].set(new_all, mode="drop")
    u_pos_updated = u_pos.at[scatter_idx, 0].set(new_pos, mode="drop")
    return loss, u_all_updated, u_pos_updated


def aploss_sh_reference(y_pred, y_true, index_s, u_all, u_pos, num_pos,
                        margin=1.0, beta=0.99):
    """Pure-JAX reference mirroring the PyTorch forward (static num_pos)."""
    n = y_pred.shape[0]
    order = jnp.argsort(1.0 - y_true.astype(jnp.float32), stable=True)
    vec = y_pred[order].astype(jnp.float32)
    f_ps = vec[:num_pos]
    h = jnp.maximum(margin - (f_ps[:, None] - vec[None, :]), 0.0) ** 2     # (P, n)
    pos_mask = (jnp.arange(n) < num_pos).astype(jnp.float32)[None, :]
    pos_loss = h * pos_mask
    u_all_s = (1.0 - beta) * u_all[index_s] + beta * h.mean(1, keepdims=True)
    u_pos_s = (1.0 - beta) * u_pos[index_s] + beta * pos_loss.mean(1, keepdims=True)
    p = (u_pos_s - u_all_s * pos_mask) / (u_all_s ** 2)
    loss = jnp.sum(p * h)
    return loss, u_all.at[index_s].set(u_all_s), u_pos.at[index_s].set(u_pos_s)


if __name__ == "__main__":
    key = jax.random.PRNGKey(0)
    k1, k2 = jax.random.split(key)

    # module hyper-parameters (deterministic init, as in __init__)
    data_len = 32
    margin, beta = 1.0, 0.99
    u_all = jnp.zeros((data_len, 1), jnp.float32)    # self.u_all (donated each step)
    u_pos = jnp.zeros((data_len, 1), jnp.float32)    # self.u_pos
    u_all_r = u_all + 0.0                            # independent buffers for the
    u_pos_r = u_pos + 0.0                            # reference (kernel state is donated)

    # small forward-pass inputs
    n = 16
    y_true = jnp.array([1, 0, 0, 1, 0, 1, 0, 0, 0, 1, 0, 0, 0, 0, 0, 0],
                       dtype=jnp.float32)
    num_pos = 4
    index_s = jnp.array([3, 7, 11, 19], dtype=jnp.int32)   # dataset indices of positives

    # two chained steps: the second exercises the non-zero gathered u state
    for step_key in (k1, k2):
        y_pred = jax.random.uniform(step_key, (n,), dtype=jnp.float32)

        loss_r, u_all_r, u_pos_r = aploss_sh_reference(
            y_pred, y_true, index_s, u_all_r, u_pos_r, num_pos, margin, beta)

        loss, u_all, u_pos = aploss_sh(y_pred, y_true, index_s, u_all, u_pos,
                                       margin=margin, beta=beta)
        jax.block_until_ready((loss, u_all, u_pos))

        np.testing.assert_allclose(np.asarray(loss), np.asarray(loss_r),
                                   rtol=1e-4, atol=1e-5)
        np.testing.assert_allclose(np.asarray(u_all), np.asarray(u_all_r),
                                   rtol=1e-4, atol=1e-6)
        np.testing.assert_allclose(np.asarray(u_pos), np.asarray(u_pos_r),
                                   rtol=1e-4, atol=1e-6)

    print("KERNEL_OK")
</pallas_src>

<mosaic_0001>
module attributes {stable_mosaic.version = 11 : i64} {
  func.func @_aploss_kernel(%arg0: memref<4x128xf32, #tpu.memory_space<vmem>>, %arg1: memref<16x2xf32, #tpu.memory_space<vmem>>, %arg2: memref<8x128xf32, #tpu.memory_space<vmem>>) attributes {dimension_semantics = [], scalar_prefetch = 0 : i64, scratch_operands = 0 : i64, tpu.core_type = #tpu.core_type<tc>} {
    %c0 = arith.constant 0 : index
    %c0_0 = arith.constant 0 : index
    %0 = vector.load %arg0[%c0, %c0_0] : memref<4x128xf32, #tpu.memory_space<vmem>>, vector<4x128xf32>
    %1 = vector.extract_strided_slice %0 {offsets = [0, 0], sizes = [1, 128], strides = [1, 1]} : vector<4x128xf32> to vector<1x128xf32>
    %2 = vector.extract_strided_slice %0 {offsets = [1, 0], sizes = [1, 128], strides = [1, 1]} : vector<4x128xf32> to vector<1x128xf32>
    %3 = vector.extract_strided_slice %0 {offsets = [2, 0], sizes = [1, 128], strides = [1, 1]} : vector<4x128xf32> to vector<1x128xf32>
    %4 = vector.extract_strided_slice %0 {offsets = [3, 0], sizes = [1, 128], strides = [1, 1]} : vector<4x128xf32> to vector<1x128xf32>
    %c0_1 = arith.constant 0 : index
    %c0_2 = arith.constant 0 : index
    %5 = vector.load %arg1[%c0_1, %c0_2] : memref<16x2xf32, #tpu.memory_space<vmem>>, vector<16x2xf32>
    %6 = vector.extract_strided_slice %5 {offsets = [0, 0], sizes = [16, 1], strides = [1, 1]} : vector<16x2xf32> to vector<16x1xf32>
    %7 = vector.extract_strided_slice %5 {offsets = [0, 1], sizes = [16, 1], strides = [1, 1]} : vector<16x2xf32> to vector<16x1xf32>
    %cst = arith.constant 1.000000e+00 : f32
    %8 = vector.broadcast %cst : f32 to vector<1x128xf32>
    %9 = arith.subf %8, %1 : vector<1x128xf32>
    %10 = vector.broadcast %9 : vector<1x128xf32> to vector<16x128xf32>
    %11 = vector.broadcast %6 : vector<16x1xf32> to vector<16x128xf32>
    %12 = arith.addf %10, %11 : vector<16x128xf32>
    %cst_3 = arith.constant 0.000000e+00 : f32
    %13 = vector.broadcast %cst_3 : f32 to vector<16x128xf32>
    %14 = arith.maximumf %12, %13 : vector<16x128xf32>
    %15 = arith.mulf %14, %14 : vector<16x128xf32>
    %cst_4 = arith.constant dense<0.000000e+00> : vector<128xf32>
    %16 = vector.multi_reduction <add>, %15, %cst_4 [0] : vector<16x128xf32> to vector<128xf32>
    %17 = vector.shape_cast %16 : vector<128xf32> to vector<1x128xf32>
    %18 = vector.broadcast %7 : vector<16x1xf32> to vector<16x128xf32>
    %19 = arith.mulf %15, %18 : vector<16x128xf32>
    %cst_5 = arith.constant dense<0.000000e+00> : vector<128xf32>
    %20 = vector.multi_reduction <add>, %19, %cst_5 [0] : vector<16x128xf32> to vector<128xf32>
    %21 = vector.shape_cast %20 : vector<128xf32> to vector<1x128xf32>
    %cst_6 = arith.constant 0.00999999977 : f32
    %22 = vector.broadcast %cst_6 : f32 to vector<1x128xf32>
    %23 = arith.mulf %22, %3 : vector<1x128xf32>
    %cst_7 = arith.constant 6.187500e-02 : f32
    %24 = vector.broadcast %cst_7 : f32 to vector<1x128xf32>
    %25 = arith.mulf %24, %17 : vector<1x128xf32>
    %26 = arith.addf %23, %25 : vector<1x128xf32>
    %cst_8 = arith.constant 0.00999999977 : f32
    %27 = vector.broadcast %cst_8 : f32 to vector<1x128xf32>
    %28 = arith.mulf %27, %4 : vector<1x128xf32>
    %cst_9 = arith.constant 6.187500e-02 : f32
    %29 = vector.broadcast %cst_9 : f32 to vector<1x128xf32>
    %30 = arith.mulf %29, %21 : vector<1x128xf32>
    %31 = arith.addf %28, %30 : vector<1x128xf32>
    %cst_10 = arith.constant 5.000000e-01 : f32
    %32 = vector.broadcast %cst_10 : f32 to vector<1x128xf32>
    %33 = arith.cmpf ogt, %2, %32 : vector<1x128xf32>
    %cst_11 = arith.constant 1.000000e+00 : f32
    %34 = vector.broadcast %cst_11 : f32 to vector<1x128xf32>
    %35 = arith.select %33, %26, %34 : vector<1x128xi1>, vector<1x128xf32>
    %36 = arith.mulf %31, %17 : vector<1x128xf32>
    %37 = arith.mulf %35, %35 : vector<1x128xf32>
    %38 = arith.divf %36, %37 : vector<1x128xf32>
    %39 = arith.divf %21, %35 : vector<1x128xf32>
    %40 = arith.subf %38, %39 : vector<1x128xf32>
    %cst_12 = arith.constant 0.000000e+00 : f32
    %41 = vector.broadcast %cst_12 : f32 to vector<1x128xf32>
    %42 = arith.select %33, %40, %41 : vector<1x128xi1>, vector<1x128xf32>
    %cst_13 = arith.constant dense<0.000000e+00> : vector<1xf32>
    %43 = vector.multi_reduction <add>, %42, %cst_13 [1] : vector<1x128xf32> to vector<1xf32>
    %44 = vector.shape_cast %43 : vector<1xf32> to vector<1x1xf32>
    %45 = tpu.iota {dimensions = array<i32: 0>} : vector<8x128xi32>
    %c0_i32 = arith.constant 0 : i32
    %46 = vector.broadcast %c0_i32 : i32 to vector<8x128xi32>
    %47 = arith.cmpi eq, %45, %46 : vector<8x128xi32>
    %c1_i32 = arith.constant 1 : i32
    %48 = vector.broadcast %c1_i32 : i32 to vector<8x128xi32>
    %49 = arith.cmpi eq, %45, %48 : vector<8x128xi32>
    %c2_i32 = arith.constant 2 : i32
    %50 = vector.broadcast %c2_i32 : i32 to vector<8x128xi32>
    %51 = arith.cmpi eq, %45, %50 : vector<8x128xi32>
    %cst_14 = arith.constant 0.000000e+00 : f32
    %52 = vector.shape_cast %44 : vector<1x1xf32> to vector<1x1xf32>
    %53 = vector.broadcast %52 : vector<1x1xf32> to vector<8x128xf32>
    %54 = vector.broadcast %cst_14 : f32 to vector<8x128xf32>
    %55 = arith.select %51, %53, %54 : vector<8x128xi1>, vector<8x128xf32>
    %56 = vector.shape_cast %31 : vector<1x128xf32> to vector<1x128xf32>
    %57 = vector.broadcast %56 : vector<1x128xf32> to vector<8x128xf32>
    %58 = arith.select %49, %57, %55 : vector<8x128xi1>, vector<8x128xf32>
    %59 = vector.shape_cast %26 : vector<1x128xf32> to vector<1x128xf32>
    %60 = vector.broadcast %59 : vector<1x128xf32> to vector<8x128xf32>
    %61 = arith.select %47, %60, %58 : vector<8x128xi1>, vector<8x128xf32>
    %c0_15 = arith.constant 0 : index
    %c0_16 = arith.constant 0 : index
    %62 = vector.load %arg2[%c0_15, %c0_16] : memref<8x128xf32, #tpu.memory_space<vmem>>, vector<8x128xf32>
    tpu.vector_store %arg2[%c0_15, %c0_16], %61 {strides = array<i32>} : memref<8x128xf32, #tpu.memory_space<vmem>>, vector<8x128xf32>,
    return
  }
}

</mosaic_0001>

<llo_original>
// kernel: aploss_sh.1
$region0: #{aploss_sh.1}
  #allocation0 [shape = 'u32[]', space=smem, size = 0x4, offset = 0x4, fixed_abs, tag = 'smem constant byte address 0x4 - core index']
  #allocation1 [shape = 'u32[144,128]{1,0:T(1,128)}', space=vmem, size = 0x12000, scoped, tag = 'internal scratch']
  %s0 = inlined_call_operand.vmem [shape: f32[4,128], index: 0, kind: input, shape index: {}]
  %s1 = inlined_call_operand.vmem [shape: f32[16,2], index: 1, kind: input, shape index: {}]
  %s2 = inlined_call_operand.vmem [shape: f32[8,128], index: 2, kind: output, shape index: {}]
  %s3 = sld [smem:[#allocation0]]
  $region18: #{aploss_sh.1} parent=0
    _
  %s5 = ssub.s32 1, %s3
  %s6 = scalar_select 0, %s5, %s3
  // Predicated region
  $region2: #{aploss_sh.1} parent=0 // pred_check
    _
  $region3: #{aploss_sh.1} parent=0 // pred_check_branch
    %8 = sbr.rel (0) target = $region5
  $region4: #{aploss_sh.1} parent=0 // pred_region
    _
  $region5: #{aploss_sh.1} parent=0 // pred_fallthru
    _
  // Predicated region
  $region6: #{aploss_sh.1} parent=0 // pred_check
    _
  $region7: #{aploss_sh.1} parent=0 // pred_check_branch
    %10 = sbr.rel (0) target = $region9
  $region8: #{aploss_sh.1} parent=0 // pred_region
    _
  $region9: #{aploss_sh.1} parent=0 // pred_fallthru
    _
  %v11 = vld [vmem:[%s0] sm:$0xf]
  %v12 = vld [vmem:[%s1] sm:$0xff]
  %v13 = vld [vmem:[%s1 + $0x8] sm:$0xff]
  %v14 = vsub.f32 1.0, %v11
  %v15 = vlaneseq
  %v16 = vshrl.u32 %v15, 7
  %v17 = vsub.s32 0, %v16
  %v18 = vrot.slane %v14, %v17
  %20 = vset.pattern.permute.xlu0 0
  %21 = vperm.xlu0 %20, %v12
  %v22 = vpop.permute.xlu0 %21
  %25 = vset.pattern.permute.xlu0 0
  %26 = vperm.xlu0 %25, %v13
  %v27 = vpop.permute.xlu0 %26
  %v29 = vadd.f32 %v18, %v22
  %v30 = vadd.f32 %v18, %v27
  %v31 = vmax.f32 %v29, 0.0
  %v32 = vmax.f32 %v30, 0.0
  %v33 = vmul.f32 %v31, %v31
  %v34 = vmul.f32 %v32, %v32
  %v35 = vadd.f32 %v33, %v34
  %v36 = vrot.slane %v35, 4
  %v37 = vadd.f32 %v35, %v36
  %v38 = vrot.slane %v37, 2
  %v39 = vadd.f32 %v37, %v38
  %v40 = vrot.slane %v39, 1
  %v41 = vadd.f32 %v39, %v40
  %42 = vset.pattern.permute.xlu0 1
  %43 = vperm.xlu0 %42, %v12
  %v44 = vpop.permute.xlu0 %43
  %46 = vset.pattern.permute.xlu0 1
  %47 = vperm.xlu0 %46, %v13
  %v48 = vpop.permute.xlu0 %47
  %v50 = vmul.f32 %v33, %v44
  %v51 = vmul.f32 %v34, %v48
  %v52 = vadd.f32 %v50, %v51
  %v53 = vrot.slane %v52, 4
  %v54 = vadd.f32 %v52, %v53
  %v55 = vrot.slane %v54, 2
  %v56 = vadd.f32 %v54, %v55
  %v57 = vrot.slane %v56, 1
  %v58 = vadd.f32 %v56, %v57
  %v59 = vmul.f32 %v11, 0.01
  %v60 = vmul.f32 %v41, 0.061875
  %v61 = vadd.f32 %v59, %v60
  %v62 = vmul.f32 %v58, 0.061875
  %v63 = vadd.f32 %v59, %v62
  %vm64 = vcmp.gt.f32.partialorder %v11, 0.5
  %v66 = vrot.slane %v61, 1
  %v68 = vsel %vm64, %v66, 1.0
  %v69 = vmul.f32 %v63, %v41
  %v70 = vmul.f32 %v68, %v68
  %v72 = vrot.slane %v70, 6
  %v74 = vrcp.pop %v72
  %v75 = vmul.f32 %v69, %v74
  %v76 = vrcp.pop %v68
  %v77 = vmul.f32 %v58, %v76
  %v79 = vrot.slane %v77, 6
  %v81 = vsub.f32 %v75, %v79
  %v83 = vrot.slane %v81, 2
  %v85 = vsel %vm64, %v83, 0.0
  %vm86 = vcmask 1041409
  %v87 = vsel %vm86, %v85, 0.0
  %88 = vadd.xlane.f32.xlu0 %v87
  %v89 = vpop.xlane.xlu0 %88
  %v90 = vlaneseq
  %v91 = vshrl.u32 %v90, 7
  %vm92 = vcmp.eq.s32.totalorder %v91, 0
  %vm93 = vcmp.eq.s32.totalorder %v91, 1
  %vm94 = vcmp.eq.s32.totalorder %v91, 2
  %v95 = vlaneseq
  %v96 = vshrl.u32 %v95, 7
  %v97 = vsub.s32 1, %v96
  %v98 = vrot.slane %v89, %v97
  %v99 = vsel %vm94, %v98, 0.0
  %v100 = vlaneseq
  %v101 = vshrl.u32 %v100, 7
  %v102 = vsub.s32 3, %v101
  %v103 = vrot.slane %v63, %v102
  %v104 = vsel %vm93, %v103, %v99
  %v105 = vlaneseq
  %v106 = vshrl.u32 %v105, 7
  %v107 = vsub.s32 2, %v106
  %v108 = vrot.slane %v61, %v107
  %v109 = vsel %vm92, %v108, %v104
  %110 = vst [vmem:[%s2] sm:$0xff] %v109
  // Predicated region
  $region10: #{aploss_sh.1} parent=0 // pred_check
    _
  $region11: #{aploss_sh.1} parent=0 // pred_check_branch
    %112 = sbr.rel (0) target = $region13
  $region12: #{aploss_sh.1} parent=0 // pred_region
    _
  $region13: #{aploss_sh.1} parent=0 // pred_fallthru
    _
  // Predicated region
  $region14: #{aploss_sh.1} parent=0 // pred_check
    _
  $region15: #{aploss_sh.1} parent=0 // pred_check_branch
    %114 = sbr.rel (0) target = $region17
  $region16: #{aploss_sh.1} parent=0 // pred_region
    _
  $region17: #{aploss_sh.1} parent=0 // pred_fallthru
    _

</llo_original>
